<compile_context>
chip_gen: v7x
topology: tpu7x:2x2x1
jax: 0.10.0
libtpu: 0.0.40
codegen_flags: <defaults>
</compile_context>

<pallas_src>
import functools

import numpy as np
import jax
import jax.numpy as jnp
from jax import lax
from jax.experimental import pallas as pl
from jax.experimental.pallas import tpu as pltpu

EPS = 1e-5  # PyTorch InstanceNorm2d default (affine=False, no running stats)


# ---------------------------------------------------------------------------
# Kernel
# ---------------------------------------------------------------------------
def _residual_block_kernel(x_ref, w1_ref, w2_ref, o_ref, rhs_ref, *, C, H, W):
    """One image: x -> conv/IN/ReLU -> conv/IN -> + x, all in VMEM."""
    L = H * W
    inv_n = 1.0 / float(L)

    # Boundary masks in the lane-dense flat layout p = i*W + j (VPU iota work
    # computed once per grid step and shared by both convs; no HBM traffic).
    p = lax.broadcasted_iota(jnp.int32, (1, L), 1)
    j = p % W
    col_first = j == 0                       # j == 0      -> reflected col 1
    col_last = j == W - 1                    # j == W-1    -> reflected col W-2
    row_first = p < W                        # i == 0      -> reflected row 1
    row_last = p >= L - W                    # i == H-1    -> reflected row H-2

    def conv3x3_instnorm(src, w_ref):
        """Reflect-padded 3x3 conv as ONE stacked-K MXU matmul + InstanceNorm.

        src   : (C, L) bf16, lane-dense flat image.
        w_ref : (C, 9C) bf16, column block k = 3*kh + kw holds w[:, :, kh, kw].
        Returns (C, L) f32, instance-normalized (affine=False, biased var).
        """
        # Row shifts by a full row of W lanes.  jnp.roll lowers to lane
        # slices + concat (unambiguous semantics); the cyclic wrap only touches
        # the first/last image row, which the select overrides with the
        # reflected row.
        # TODO(synk): swap jnp.roll for pltpu.roll to ride the XLU slot once
        # its rotation direction is pinned down for this layout.
        dn = jnp.roll(src, L - W, axis=1)            # dn[p] = src[p + W]
        up = jnp.roll(src, W, axis=1)                # up[p] = src[p - W]
        rows = (jnp.where(row_first, dn, up),        # kh=0: row R(i-1)
                src,                                 # kh=1: row i
                jnp.where(row_last, up, dn))         # kh=2: row R(i+1)
        k = 0
        for r in rows:
            cm = jnp.roll(r, 1, axis=1)              # cm[p] = r[p - 1]
            cp = jnp.roll(r, L - 1, axis=1)          # cp[p] = r[p + 1]
            for tap in (jnp.where(col_first, cp, cm),   # kw=0: col R(j-1)
                        r,                              # kw=1: col j
                        jnp.where(col_last, cm, cp)):   # kw=2: col R(j+1)
                rhs_ref[k * C:(k + 1) * C, :] = tap     # stack along K
                k += 1

        # Single MXU matmul with K = 9C; accumulation stays on the MXU.
        acc = jnp.dot(w_ref[...], rhs_ref[...],
                      preferred_element_type=jnp.float32)       # (C, L) f32

        # InstanceNorm2d(affine=False): every lane is a real pixel -> no mask.
        mean = jnp.sum(acc, axis=1, keepdims=True) * inv_n
        cen = acc - mean
        var = jnp.sum(cen * cen, axis=1, keepdims=True) * inv_n  # biased (PyTorch IN)
        return cen * lax.rsqrt(var + EPS)

    x = x_ref[0]                                       # (C, L) f32, lane-dense
    h = jnp.maximum(conv3x3_instnorm(x.astype(jnp.bfloat16), w1_ref), 0.0)
    y = conv3x3_instnorm(h.astype(jnp.bfloat16), w2_ref)
    o_ref[0] = x + y                                   # residual add in f32


# ---------------------------------------------------------------------------
# Wrapper (only free reshapes + weight restacking; all math is in the kernel)
# ---------------------------------------------------------------------------
def residual_block(x, w1, b1, w2, b2):
    """Forward pass of the PyTorch ResidualBlock.

    b1/b2 are accepted for interface parity but ignored: InstanceNorm2d with
    affine=False subtracts the per-channel mean, so a conv bias is an exact
    no-op.
    """
    del b1, b2
    N, C, H, W = x.shape
    L = H * W

    # Contiguous reshape -> no HBM copy (kernel consumes lane-dense (C, L)).
    x_flat = x.astype(jnp.float32).reshape(N, C, L)

    def stack_taps(w):   # (O, I, 3, 3) -> (O, 9I), column block k = 3*kh + kw
        return jnp.transpose(w, (0, 2, 3, 1)).reshape(C, 9 * C).astype(jnp.bfloat16)

    w1s, w2s = stack_taps(w1), stack_taps(w2)

    kernel = functools.partial(_residual_block_kernel, C=C, H=H, W=W)

    # Generation-aware scoped-VMEM request (double-buffered in/out blocks,
    # stacked-RHS scratch, bf16 shift temporaries, f32 norm temporaries),
    # clamped below physical VMEM of the current TPU generation.
    per_step = (4 * C * L * 4              # input + output blocks, double-buffered f32
                + 4 * 9 * C * C * 2        # both stacked weight blocks (bf16)
                + 9 * C * L * 2            # stacked-K RHS scratch (bf16)
                + 12 * C * L * 2           # shifted-tap temporaries (bf16)
                + 8 * C * L * 4)           # f32 acc / centred / h temporaries
    vmem_cap = 128 * 1024 * 1024
    try:
        vmem_cap = int(pltpu.get_tpu_info().vmem_capacity_bytes)
    except Exception:
        pass                               # fall back to a conservative default
    vmem_limit = int(min(max(2 * per_step, 32 * 1024 * 1024), (vmem_cap * 7) // 8))

    # TODO(synk): for very large C*H*W on v7x (64 MiB VMEM) add a second
    # "parallel" grid axis that row-tiles H with a 1-row halo, and for tiny C
    # block several batch images per grid step to amortise per-step overhead.
    out_flat = pl.pallas_call(
        kernel,
        out_shape=jax.ShapeDtypeStruct((N, C, L), jnp.float32),
        grid=(N,),
        in_specs=[
            pl.BlockSpec((1, C, L), lambda n: (n, 0, 0)),     # x, lane-dense flat
            pl.BlockSpec((C, 9 * C), lambda n: (0, 0)),       # conv1 stacked taps
            pl.BlockSpec((C, 9 * C), lambda n: (0, 0)),       # conv2 stacked taps
        ],
        out_specs=pl.BlockSpec((1, C, L), lambda n: (n, 0, 0)),
        scratch_shapes=[pltpu.VMEM((9 * C, L), jnp.bfloat16)],  # stacked-K RHS
        compiler_params=pltpu.CompilerParams(
            dimension_semantics=("parallel",),
            vmem_limit_bytes=vmem_limit),
    )(x_flat, w1s, w2s)

    # Contiguous reshape back -> no HBM copy.
    return out_flat.reshape(N, C, H, W)


# ---------------------------------------------------------------------------
# Pure-JAX references (for correctness checks)
# ---------------------------------------------------------------------------
def _ref_conv_in(h, w, b, conv_dtype):
    hp = jnp.pad(h, ((0, 0), (0, 0), (1, 1), (1, 1)), mode="reflect").astype(conv_dtype)
    y = lax.conv_general_dilated(
        hp, w.astype(conv_dtype), window_strides=(1, 1), padding="VALID",
        dimension_numbers=("NCHW", "OIHW", "NCHW"),
        preferred_element_type=jnp.float32)
    y = y + b[None, :, None, None]
    m = y.mean(axis=(2, 3), keepdims=True)
    v = ((y - m) ** 2).mean(axis=(2, 3), keepdims=True)
    return (y - m) * lax.rsqrt(v + EPS)


def ref_residual_block(x, w1, b1, w2, b2, conv_dtype=jnp.float32):
    h = jnp.maximum(_ref_conv_in(x, w1, b1, conv_dtype), 0.0)
    return x + _ref_conv_in(h, w2, b2, conv_dtype)


if __name__ == "__main__":
    # small deterministic problem: batch=2, in_features=4, spatial=16x16
    N, C, H, W = 2, 4, 16, 16
    key = jax.random.PRNGKey(0)
    kx, kw1, kb1, kw2, kb2 = jax.random.split(key, 5)

    x = jax.random.normal(kx, (N, C, H, W), dtype=jnp.float32)

    fan_in = 9 * C
    bound = float(1.0 / np.sqrt(fan_in))
    w1 = jax.random.uniform(kw1, (C, C, 3, 3), jnp.float32, -bound, bound)
    b1 = jax.random.uniform(kb1, (C,), jnp.float32, -bound, bound)
    w2 = jax.random.uniform(kw2, (C, C, 3, 3), jnp.float32, -bound, bound)
    b2 = jax.random.uniform(kb2, (C,), jnp.float32, -bound, bound)

    out = jax.block_until_ready(jax.jit(residual_block)(x, w1, b1, w2, b2))
    assert out.shape == (N, C, H, W)

    # Structural check: reference that mirrors the kernel's bf16 matmul operands.
    ref_bf16 = ref_residual_block(x, w1, b1, w2, b2, conv_dtype=jnp.bfloat16)
    assert jnp.allclose(out, ref_bf16, atol=1e-2, rtol=1e-2), "mismatch vs bf16 reference"

    # Full-precision PyTorch-semantics reference (looser tol: bf16 matmul quantization).
    ref_f32 = ref_residual_block(x, w1, b1, w2, b2, conv_dtype=jnp.float32)
    assert jnp.allclose(out, ref_f32, atol=5e-2, rtol=5e-2), "mismatch vs f32 reference"

    print("KERNEL_OK")
</pallas_src>

<mosaic_0001>
module attributes {stable_mosaic.version = 11 : i64} {
  func.func @_residual_block_kernel(%arg0: i32, %arg1: memref<1x4x256xf32, #tpu.memory_space<vmem>>, %arg2: memref<4x36xbf16, #tpu.memory_space<vmem>>, %arg3: memref<4x36xbf16, #tpu.memory_space<vmem>>, %arg4: memref<1x4x256xf32, #tpu.memory_space<vmem>>, %arg5: memref<36x256xbf16, #tpu.memory_space<vmem>>) attributes {dimension_semantics = [#tpu.dimension_semantics<parallel>], iteration_bounds = array<i64: 2>, scalar_prefetch = 0 : i64, scratch_operands = 1 : i64, tpu.core_type = #tpu.core_type<tc>, window_params = [{transform_indices = @transform_0, window_bounds = array<i64: 1, 4, 256>}, {pipeline_mode = #tpu.pipeline_mode<synchronous>, transform_indices = @transform_1, window_bounds = array<i64: 4, 36>}, {pipeline_mode = #tpu.pipeline_mode<synchronous>, transform_indices = @transform_2, window_bounds = array<i64: 4, 36>}, {transform_indices = @transform_3, window_bounds = array<i64: 1, 4, 256>}]} {
    %0 = tpu.iota {dimensions = array<i32: 1>} : vector<1x256xi32>
    %c16_i32 = arith.constant 16 : i32
    %c0_i32 = arith.constant 0 : i32
    %1 = arith.cmpi eq, %c16_i32, %c0_i32 : i32
    %c1_i32 = arith.constant 1 : i32
    %2 = arith.select %1, %c1_i32, %c16_i32 : i32
    %3 = vector.broadcast %2 : i32 to vector<1x256xi32>
    %4 = arith.remsi %0, %3 : vector<1x256xi32>
    %c0_i32_0 = arith.constant 0 : i32
    %5 = vector.broadcast %c0_i32_0 : i32 to vector<1x256xi32>
    %6 = arith.cmpi ne, %4, %5 : vector<1x256xi32>
    %c0_i32_1 = arith.constant 0 : i32
    %7 = vector.broadcast %c0_i32_1 : i32 to vector<1x256xi32>
    %8 = arith.cmpi slt, %4, %7 : vector<1x256xi32>
    %c0_i32_2 = arith.constant 0 : i32
    %9 = arith.cmpi slt, %2, %c0_i32_2 : i32
    %10 = vector.broadcast %9 : i1 to vector<1x256xi1>
    %11 = vector.broadcast %10 : vector<1x256xi1> to vector<1x256xi1>
    %12 = arith.xori %8, %11 : vector<1x256xi1>
    %13 = arith.andi %12, %6 : vector<1x256xi1>
    %14 = vector.broadcast %2 : i32 to vector<1x256xi32>
    %15 = arith.addi %4, %14 : vector<1x256xi32>
    %16 = arith.select %13, %15, %4 : vector<1x256xi1>, vector<1x256xi32>
    %c0_i32_3 = arith.constant 0 : i32
    %17 = vector.broadcast %c0_i32_3 : i32 to vector<1x256xi32>
    %18 = arith.cmpi eq, %16, %17 : vector<1x256xi32>
    %c15_i32 = arith.constant 15 : i32
    %19 = vector.broadcast %c15_i32 : i32 to vector<1x256xi32>
    %20 = arith.cmpi eq, %16, %19 : vector<1x256xi32>
    %c16_i32_4 = arith.constant 16 : i32
    %21 = vector.broadcast %c16_i32_4 : i32 to vector<1x256xi32>
    %22 = arith.cmpi slt, %0, %21 : vector<1x256xi32>
    %c240_i32 = arith.constant 240 : i32
    %23 = vector.broadcast %c240_i32 : i32 to vector<1x256xi32>
    %24 = arith.cmpi sge, %0, %23 : vector<1x256xi32>
    %c0 = arith.constant 0 : index
    %c0_5 = arith.constant 0 : index
    %c0_6 = arith.constant 0 : index
    %25 = vector.load %arg1[%c0, %c0_5, %c0_6] : memref<1x4x256xf32, #tpu.memory_space<vmem>>, vector<1x4x256xf32>
    %26 = vector.shape_cast %25 : vector<1x4x256xf32> to vector<4x256xf32>
    %27 = arith.truncf %26 : vector<4x256xf32> to vector<4x256xbf16>
    %28 = vector.extract_strided_slice %27 {offsets = [0, 16], sizes = [4, 240], strides = [1, 1]} : vector<4x256xbf16> to vector<4x240xbf16>
    %29 = vector.extract_strided_slice %27 {offsets = [0, 0], sizes = [4, 16], strides = [1, 1]} : vector<4x256xbf16> to vector<4x16xbf16>
    %30 = tpu.concatenate %28, %29 in 1 : vector<4x240xbf16>, vector<4x16xbf16> -> vector<4x256xbf16>
    %31 = vector.extract_strided_slice %27 {offsets = [0, 240], sizes = [4, 16], strides = [1, 1]} : vector<4x256xbf16> to vector<4x16xbf16>
    %32 = vector.extract_strided_slice %27 {offsets = [0, 0], sizes = [4, 240], strides = [1, 1]} : vector<4x256xbf16> to vector<4x240xbf16>
    %33 = tpu.concatenate %31, %32 in 1 : vector<4x16xbf16>, vector<4x240xbf16> -> vector<4x256xbf16>
    %34 = vector.shape_cast %22 : vector<1x256xi1> to vector<1x256xi1>
    %35 = vector.broadcast %34 : vector<1x256xi1> to vector<4x256xi1>
    %36 = arith.select %35, %30, %33 : vector<4x256xi1>, vector<4x256xbf16>
    %37 = vector.shape_cast %24 : vector<1x256xi1> to vector<1x256xi1>
    %38 = vector.broadcast %37 : vector<1x256xi1> to vector<4x256xi1>
    %39 = arith.select %38, %33, %30 : vector<4x256xi1>, vector<4x256xbf16>
    %40 = vector.extract_strided_slice %36 {offsets = [0, 255], sizes = [4, 1], strides = [1, 1]} : vector<4x256xbf16> to vector<4x1xbf16>
    %41 = vector.extract_strided_slice %36 {offsets = [0, 0], sizes = [4, 255], strides = [1, 1]} : vector<4x256xbf16> to vector<4x255xbf16>
    %42 = tpu.concatenate %40, %41 in 1 : vector<4x1xbf16>, vector<4x255xbf16> -> vector<4x256xbf16>
    %43 = vector.extract_strided_slice %36 {offsets = [0, 1], sizes = [4, 255], strides = [1, 1]} : vector<4x256xbf16> to vector<4x255xbf16>
    %44 = vector.extract_strided_slice %36 {offsets = [0, 0], sizes = [4, 1], strides = [1, 1]} : vector<4x256xbf16> to vector<4x1xbf16>
    %45 = tpu.concatenate %43, %44 in 1 : vector<4x255xbf16>, vector<4x1xbf16> -> vector<4x256xbf16>
    %46 = vector.shape_cast %18 : vector<1x256xi1> to vector<1x256xi1>
    %47 = vector.broadcast %46 : vector<1x256xi1> to vector<4x256xi1>
    %48 = arith.select %47, %45, %42 : vector<4x256xi1>, vector<4x256xbf16>
    %49 = vector.shape_cast %20 : vector<1x256xi1> to vector<1x256xi1>
    %50 = vector.broadcast %49 : vector<1x256xi1> to vector<4x256xi1>
    %51 = arith.select %50, %42, %45 : vector<4x256xi1>, vector<4x256xbf16>
    %c0_7 = arith.constant 0 : index
    %c0_8 = arith.constant 0 : index
    %52 = vector.load %arg5[%c0_7, %c0_8] : memref<36x256xbf16, #tpu.memory_space<vmem>>, vector<4x256xbf16>
    tpu.vector_store %arg5[%c0_7, %c0_8], %48 {strides = array<i32>} : memref<36x256xbf16, #tpu.memory_space<vmem>>, vector<4x256xbf16>,
    %c4 = arith.constant 4 : index
    %c0_9 = arith.constant 0 : index
    %53 = vector.load %arg5[%c4, %c0_9] : memref<36x256xbf16, #tpu.memory_space<vmem>>, vector<4x256xbf16>
    tpu.vector_store %arg5[%c4, %c0_9], %36 {strides = array<i32>} : memref<36x256xbf16, #tpu.memory_space<vmem>>, vector<4x256xbf16>,
    %c8 = arith.constant 8 : index
    %c0_10 = arith.constant 0 : index
    %54 = vector.load %arg5[%c8, %c0_10] : memref<36x256xbf16, #tpu.memory_space<vmem>>, vector<4x256xbf16>
    tpu.vector_store %arg5[%c8, %c0_10], %51 {strides = array<i32>} : memref<36x256xbf16, #tpu.memory_space<vmem>>, vector<4x256xbf16>,
    %55 = vector.extract_strided_slice %27 {offsets = [0, 255], sizes = [4, 1], strides = [1, 1]} : vector<4x256xbf16> to vector<4x1xbf16>
    %56 = vector.extract_strided_slice %27 {offsets = [0, 0], sizes = [4, 255], strides = [1, 1]} : vector<4x256xbf16> to vector<4x255xbf16>
    %57 = tpu.concatenate %55, %56 in 1 : vector<4x1xbf16>, vector<4x255xbf16> -> vector<4x256xbf16>
    %58 = vector.extract_strided_slice %27 {offsets = [0, 1], sizes = [4, 255], strides = [1, 1]} : vector<4x256xbf16> to vector<4x255xbf16>
    %59 = vector.extract_strided_slice %27 {offsets = [0, 0], sizes = [4, 1], strides = [1, 1]} : vector<4x256xbf16> to vector<4x1xbf16>
    %60 = tpu.concatenate %58, %59 in 1 : vector<4x255xbf16>, vector<4x1xbf16> -> vector<4x256xbf16>
    %61 = vector.shape_cast %18 : vector<1x256xi1> to vector<1x256xi1>
    %62 = vector.broadcast %61 : vector<1x256xi1> to vector<4x256xi1>
    %63 = arith.select %62, %60, %57 : vector<4x256xi1>, vector<4x256xbf16>
    %64 = vector.shape_cast %20 : vector<1x256xi1> to vector<1x256xi1>
    %65 = vector.broadcast %64 : vector<1x256xi1> to vector<4x256xi1>
    %66 = arith.select %65, %57, %60 : vector<4x256xi1>, vector<4x256xbf16>
    %c12 = arith.constant 12 : index
    %c0_11 = arith.constant 0 : index
    %67 = vector.load %arg5[%c12, %c0_11] : memref<36x256xbf16, #tpu.memory_space<vmem>>, vector<4x256xbf16>
    tpu.vector_store %arg5[%c12, %c0_11], %63 {strides = array<i32>} : memref<36x256xbf16, #tpu.memory_space<vmem>>, vector<4x256xbf16>,
    %c16 = arith.constant 16 : index
    %c0_12 = arith.constant 0 : index
    %68 = vector.load %arg5[%c16, %c0_12] : memref<36x256xbf16, #tpu.memory_space<vmem>>, vector<4x256xbf16>
    tpu.vector_store %arg5[%c16, %c0_12], %27 {strides = array<i32>} : memref<36x256xbf16, #tpu.memory_space<vmem>>, vector<4x256xbf16>,
    %c20 = arith.constant 20 : index
    %c0_13 = arith.constant 0 : index
    %69 = vector.load %arg5[%c20, %c0_13] : memref<36x256xbf16, #tpu.memory_space<vmem>>, vector<4x256xbf16>
    tpu.vector_store %arg5[%c20, %c0_13], %66 {strides = array<i32>} : memref<36x256xbf16, #tpu.memory_space<vmem>>, vector<4x256xbf16>,
    %70 = vector.extract_strided_slice %39 {offsets = [0, 255], sizes = [4, 1], strides = [1, 1]} : vector<4x256xbf16> to vector<4x1xbf16>
    %71 = vector.extract_strided_slice %39 {offsets = [0, 0], sizes = [4, 255], strides = [1, 1]} : vector<4x256xbf16> to vector<4x255xbf16>
    %72 = tpu.concatenate %70, %71 in 1 : vector<4x1xbf16>, vector<4x255xbf16> -> vector<4x256xbf16>
    %73 = vector.extract_strided_slice %39 {offsets = [0, 1], sizes = [4, 255], strides = [1, 1]} : vector<4x256xbf16> to vector<4x255xbf16>
    %74 = vector.extract_strided_slice %39 {offsets = [0, 0], sizes = [4, 1], strides = [1, 1]} : vector<4x256xbf16> to vector<4x1xbf16>
    %75 = tpu.concatenate %73, %74 in 1 : vector<4x255xbf16>, vector<4x1xbf16> -> vector<4x256xbf16>
    %76 = vector.shape_cast %18 : vector<1x256xi1> to vector<1x256xi1>
    %77 = vector.broadcast %76 : vector<1x256xi1> to vector<4x256xi1>
    %78 = arith.select %77, %75, %72 : vector<4x256xi1>, vector<4x256xbf16>
    %79 = vector.shape_cast %20 : vector<1x256xi1> to vector<1x256xi1>
    %80 = vector.broadcast %79 : vector<1x256xi1> to vector<4x256xi1>
    %81 = arith.select %80, %72, %75 : vector<4x256xi1>, vector<4x256xbf16>
    %c24 = arith.constant 24 : index
    %c0_14 = arith.constant 0 : index
    %82 = vector.load %arg5[%c24, %c0_14] : memref<36x256xbf16, #tpu.memory_space<vmem>>, vector<4x256xbf16>
    tpu.vector_store %arg5[%c24, %c0_14], %78 {strides = array<i32>} : memref<36x256xbf16, #tpu.memory_space<vmem>>, vector<4x256xbf16>,
    %c28 = arith.constant 28 : index
    %c0_15 = arith.constant 0 : index
    %83 = vector.load %arg5[%c28, %c0_15] : memref<36x256xbf16, #tpu.memory_space<vmem>>, vector<4x256xbf16>
    tpu.vector_store %arg5[%c28, %c0_15], %39 {strides = array<i32>} : memref<36x256xbf16, #tpu.memory_space<vmem>>, vector<4x256xbf16>,
    %c32 = arith.constant 32 : index
    %c0_16 = arith.constant 0 : index
    %84 = vector.load %arg5[%c32, %c0_16] : memref<36x256xbf16, #tpu.memory_space<vmem>>, vector<4x256xbf16>
    tpu.vector_store %arg5[%c32, %c0_16], %81 {strides = array<i32>} : memref<36x256xbf16, #tpu.memory_space<vmem>>, vector<4x256xbf16>,
    %c0_17 = arith.constant 0 : index
    %c0_18 = arith.constant 0 : index
    %85 = vector.load %arg2[%c0_17, %c0_18] : memref<4x36xbf16, #tpu.memory_space<vmem>>, vector<4x36xbf16>
    %c0_19 = arith.constant 0 : index
    %c0_20 = arith.constant 0 : index
    %86 = vector.load %arg5[%c0_19, %c0_20] : memref<36x256xbf16, #tpu.memory_space<vmem>>, vector<36x256xbf16>
    %cst = arith.constant dense<0.000000e+00> : vector<4x256xf32>
    %87 = tpu.matmul %85, %86, %cst {dimension_numbers = #tpu.dot_dimension_numbers<[1], [0], [0], [1], [0, 0, 1, 1], [], []>} : vector<4x36xbf16>, vector<36x256xbf16>, vector<4x256xf32> -> vector<4x256xf32>
    %cst_21 = arith.constant dense<0.000000e+00> : vector<4xf32>
    %88 = vector.multi_reduction <add>, %87, %cst_21 [1] : vector<4x256xf32> to vector<4xf32>
    %89 = vector.shape_cast %88 : vector<4xf32> to vector<4x1xf32>
    %cst_22 = arith.constant 3.906250e-03 : f32
    %90 = vector.broadcast %cst_22 : f32 to vector<4x1xf32>
    %91 = arith.mulf %89, %90 : vector<4x1xf32>
    %92 = vector.broadcast %91 : vector<4x1xf32> to vector<4x256xf32>
    %93 = arith.subf %87, %92 : vector<4x256xf32>
    %94 = arith.mulf %93, %93 : vector<4x256xf32>
    %cst_23 = arith.constant dense<0.000000e+00> : vector<4xf32>
    %95 = vector.multi_reduction <add>, %94, %cst_23 [1] : vector<4x256xf32> to vector<4xf32>
    %96 = vector.shape_cast %95 : vector<4xf32> to vector<4x1xf32>
    %cst_24 = arith.constant 3.906250e-03 : f32
    %97 = vector.broadcast %cst_24 : f32 to vector<4x1xf32>
    %98 = arith.mulf %96, %97 : vector<4x1xf32>
    %cst_25 = arith.constant 9.99999974E-6 : f32
    %99 = vector.broadcast %cst_25 : f32 to vector<4x1xf32>
    %100 = arith.addf %98, %99 : vector<4x1xf32>
    %101 = math.rsqrt %100 : vector<4x1xf32>
    %102 = vector.broadcast %101 : vector<4x1xf32> to vector<4x256xf32>
    %103 = arith.mulf %93, %102 : vector<4x256xf32>
    %cst_26 = arith.constant 0.000000e+00 : f32
    %104 = vector.broadcast %cst_26 : f32 to vector<4x256xf32>
    %105 = arith.maximumf %103, %104 : vector<4x256xf32>
    %106 = arith.truncf %105 : vector<4x256xf32> to vector<4x256xbf16>
    %107 = vector.extract_strided_slice %106 {offsets = [0, 16], sizes = [4, 240], strides = [1, 1]} : vector<4x256xbf16> to vector<4x240xbf16>
    %108 = vector.extract_strided_slice %106 {offsets = [0, 0], sizes = [4, 16], strides = [1, 1]} : vector<4x256xbf16> to vector<4x16xbf16>
    %109 = tpu.concatenate %107, %108 in 1 : vector<4x240xbf16>, vector<4x16xbf16> -> vector<4x256xbf16>
    %110 = vector.extract_strided_slice %106 {offsets = [0, 240], sizes = [4, 16], strides = [1, 1]} : vector<4x256xbf16> to vector<4x16xbf16>
    %111 = vector.extract_strided_slice %106 {offsets = [0, 0], sizes = [4, 240], strides = [1, 1]} : vector<4x256xbf16> to vector<4x240xbf16>
    %112 = tpu.concatenate %110, %111 in 1 : vector<4x16xbf16>, vector<4x240xbf16> -> vector<4x256xbf16>
    %113 = vector.shape_cast %22 : vector<1x256xi1> to vector<1x256xi1>
    %114 = vector.broadcast %113 : vector<1x256xi1> to vector<4x256xi1>
    %115 = arith.select %114, %109, %112 : vector<4x256xi1>, vector<4x256xbf16>
    %116 = vector.shape_cast %24 : vector<1x256xi1> to vector<1x256xi1>
    %117 = vector.broadcast %116 : vector<1x256xi1> to vector<4x256xi1>
    %118 = arith.select %117, %112, %109 : vector<4x256xi1>, vector<4x256xbf16>
    %119 = vector.extract_strided_slice %115 {offsets = [0, 255], sizes = [4, 1], strides = [1, 1]} : vector<4x256xbf16> to vector<4x1xbf16>
    %120 = vector.extract_strided_slice %115 {offsets = [0, 0], sizes = [4, 255], strides = [1, 1]} : vector<4x256xbf16> to vector<4x255xbf16>
    %121 = tpu.concatenate %119, %120 in 1 : vector<4x1xbf16>, vector<4x255xbf16> -> vector<4x256xbf16>
    %122 = vector.extract_strided_slice %115 {offsets = [0, 1], sizes = [4, 255], strides = [1, 1]} : vector<4x256xbf16> to vector<4x255xbf16>
    %123 = vector.extract_strided_slice %115 {offsets = [0, 0], sizes = [4, 1], strides = [1, 1]} : vector<4x256xbf16> to vector<4x1xbf16>
    %124 = tpu.concatenate %122, %123 in 1 : vector<4x255xbf16>, vector<4x1xbf16> -> vector<4x256xbf16>
    %125 = vector.shape_cast %18 : vector<1x256xi1> to vector<1x256xi1>
    %126 = vector.broadcast %125 : vector<1x256xi1> to vector<4x256xi1>
    %127 = arith.select %126, %124, %121 : vector<4x256xi1>, vector<4x256xbf16>
    %128 = vector.shape_cast %20 : vector<1x256xi1> to vector<1x256xi1>
    %129 = vector.broadcast %128 : vector<1x256xi1> to vector<4x256xi1>
    %130 = arith.select %129, %121, %124 : vector<4x256xi1>, vector<4x256xbf16>
    %c0_27 = arith.constant 0 : index
    %c0_28 = arith.constant 0 : index
    %131 = vector.load %arg5[%c0_27, %c0_28] : memref<36x256xbf16, #tpu.memory_space<vmem>>, vector<4x256xbf16>
    tpu.vector_store %arg5[%c0_27, %c0_28], %127 {strides = array<i32>} : memref<36x256xbf16, #tpu.memory_space<vmem>>, vector<4x256xbf16>,
    %c4_29 = arith.constant 4 : index
    %c0_30 = arith.constant 0 : index
    %132 = vector.load %arg5[%c4_29, %c0_30] : memref<36x256xbf16, #tpu.memory_space<vmem>>, vector<4x256xbf16>
    tpu.vector_store %arg5[%c4_29, %c0_30], %115 {strides = array<i32>} : memref<36x256xbf16, #tpu.memory_space<vmem>>, vector<4x256xbf16>,
    %c8_31 = arith.constant 8 : index
    %c0_32 = arith.constant 0 : index
    %133 = vector.load %arg5[%c8_31, %c0_32] : memref<36x256xbf16, #tpu.memory_space<vmem>>, vector<4x256xbf16>
    tpu.vector_store %arg5[%c8_31, %c0_32], %130 {strides = array<i32>} : memref<36x256xbf16, #tpu.memory_space<vmem>>, vector<4x256xbf16>,
    %134 = vector.extract_strided_slice %106 {offsets = [0, 255], sizes = [4, 1], strides = [1, 1]} : vector<4x256xbf16> to vector<4x1xbf16>
    %135 = vector.extract_strided_slice %106 {offsets = [0, 0], sizes = [4, 255], strides = [1, 1]} : vector<4x256xbf16> to vector<4x255xbf16>
    %136 = tpu.concatenate %134, %135 in 1 : vector<4x1xbf16>, vector<4x255xbf16> -> vector<4x256xbf16>
    %137 = vector.extract_strided_slice %106 {offsets = [0, 1], sizes = [4, 255], strides = [1, 1]} : vector<4x256xbf16> to vector<4x255xbf16>
    %138 = vector.extract_strided_slice %106 {offsets = [0, 0], sizes = [4, 1], strides = [1, 1]} : vector<4x256xbf16> to vector<4x1xbf16>
    %139 = tpu.concatenate %137, %138 in 1 : vector<4x255xbf16>, vector<4x1xbf16> -> vector<4x256xbf16>
    %140 = vector.shape_cast %18 : vector<1x256xi1> to vector<1x256xi1>
    %141 = vector.broadcast %140 : vector<1x256xi1> to vector<4x256xi1>
    %142 = arith.select %141, %139, %136 : vector<4x256xi1>, vector<4x256xbf16>
    %143 = vector.shape_cast %20 : vector<1x256xi1> to vector<1x256xi1>
    %144 = vector.broadcast %143 : vector<1x256xi1> to vector<4x256xi1>
    %145 = arith.select %144, %136, %139 : vector<4x256xi1>, vector<4x256xbf16>
    %c12_33 = arith.constant 12 : index
    %c0_34 = arith.constant 0 : index
    %146 = vector.load %arg5[%c12_33, %c0_34] : memref<36x256xbf16, #tpu.memory_space<vmem>>, vector<4x256xbf16>
    tpu.vector_store %arg5[%c12_33, %c0_34], %142 {strides = array<i32>} : memref<36x256xbf16, #tpu.memory_space<vmem>>, vector<4x256xbf16>,
    %c16_35 = arith.constant 16 : index
    %c0_36 = arith.constant 0 : index
    %147 = vector.load %arg5[%c16_35, %c0_36] : memref<36x256xbf16, #tpu.memory_space<vmem>>, vector<4x256xbf16>
    tpu.vector_store %arg5[%c16_35, %c0_36], %106 {strides = array<i32>} : memref<36x256xbf16, #tpu.memory_space<vmem>>, vector<4x256xbf16>,
    %c20_37 = arith.constant 20 : index
    %c0_38 = arith.constant 0 : index
    %148 = vector.load %arg5[%c20_37, %c0_38] : memref<36x256xbf16, #tpu.memory_space<vmem>>, vector<4x256xbf16>
    tpu.vector_store %arg5[%c20_37, %c0_38], %145 {strides = array<i32>} : memref<36x256xbf16, #tpu.memory_space<vmem>>, vector<4x256xbf16>,
    %149 = vector.extract_strided_slice %118 {offsets = [0, 255], sizes = [4, 1], strides = [1, 1]} : vector<4x256xbf16> to vector<4x1xbf16>
    %150 = vector.extract_strided_slice %118 {offsets = [0, 0], sizes = [4, 255], strides = [1, 1]} : vector<4x256xbf16> to vector<4x255xbf16>
    %151 = tpu.concatenate %149, %150 in 1 : vector<4x1xbf16>, vector<4x255xbf16> -> vector<4x256xbf16>
    %152 = vector.extract_strided_slice %118 {offsets = [0, 1], sizes = [4, 255], strides = [1, 1]} : vector<4x256xbf16> to vector<4x255xbf16>
    %153 = vector.extract_strided_slice %118 {offsets = [0, 0], sizes = [4, 1], strides = [1, 1]} : vector<4x256xbf16> to vector<4x1xbf16>
    %154 = tpu.concatenate %152, %153 in 1 : vector<4x255xbf16>, vector<4x1xbf16> -> vector<4x256xbf16>
    %155 = vector.shape_cast %18 : vector<1x256xi1> to vector<1x256xi1>
    %156 = vector.broadcast %155 : vector<1x256xi1> to vector<4x256xi1>
    %157 = arith.select %156, %154, %151 : vector<4x256xi1>, vector<4x256xbf16>
    %158 = vector.shape_cast %20 : vector<1x256xi1> to vector<1x256xi1>
    %159 = vector.broadcast %158 : vector<1x256xi1> to vector<4x256xi1>
    %160 = arith.select %159, %151, %154 : vector<4x256xi1>, vector<4x256xbf16>
    %c24_39 = arith.constant 24 : index
    %c0_40 = arith.constant 0 : index
    %161 = vector.load %arg5[%c24_39, %c0_40] : memref<36x256xbf16, #tpu.memory_space<vmem>>, vector<4x256xbf16>
    tpu.vector_store %arg5[%c24_39, %c0_40], %157 {strides = array<i32>} : memref<36x256xbf16, #tpu.memory_space<vmem>>, vector<4x256xbf16>,
    %c28_41 = arith.constant 28 : index
    %c0_42 = arith.constant 0 : index
    %162 = vector.load %arg5[%c28_41, %c0_42] : memref<36x256xbf16, #tpu.memory_space<vmem>>, vector<4x256xbf16>
    tpu.vector_store %arg5[%c28_41, %c0_42], %118 {strides = array<i32>} : memref<36x256xbf16, #tpu.memory_space<vmem>>, vector<4x256xbf16>,
    %c32_43 = arith.constant 32 : index
    %c0_44 = arith.constant 0 : index
    %163 = vector.load %arg5[%c32_43, %c0_44] : memref<36x256xbf16, #tpu.memory_space<vmem>>, vector<4x256xbf16>
    tpu.vector_store %arg5[%c32_43, %c0_44], %160 {strides = array<i32>} : memref<36x256xbf16, #tpu.memory_space<vmem>>, vector<4x256xbf16>,
    %c0_45 = arith.constant 0 : index
    %c0_46 = arith.constant 0 : index
    %164 = vector.load %arg3[%c0_45, %c0_46] : memref<4x36xbf16, #tpu.memory_space<vmem>>, vector<4x36xbf16>
    %c0_47 = arith.constant 0 : index
    %c0_48 = arith.constant 0 : index
    %165 = vector.load %arg5[%c0_47, %c0_48] : memref<36x256xbf16, #tpu.memory_space<vmem>>, vector<36x256xbf16>
    %cst_49 = arith.constant dense<0.000000e+00> : vector<4x256xf32>
    %166 = tpu.matmul %164, %165, %cst_49 {dimension_numbers = #tpu.dot_dimension_numbers<[1], [0], [0], [1], [0, 0, 1, 1], [], []>} : vector<4x36xbf16>, vector<36x256xbf16>, vector<4x256xf32> -> vector<4x256xf32>
    %cst_50 = arith.constant dense<0.000000e+00> : vector<4xf32>
    %167 = vector.multi_reduction <add>, %166, %cst_50 [1] : vector<4x256xf32> to vector<4xf32>
    %168 = vector.shape_cast %167 : vector<4xf32> to vector<4x1xf32>
    %cst_51 = arith.constant 3.906250e-03 : f32
    %169 = vector.broadcast %cst_51 : f32 to vector<4x1xf32>
    %170 = arith.mulf %168, %169 : vector<4x1xf32>
    %171 = vector.broadcast %170 : vector<4x1xf32> to vector<4x256xf32>
    %172 = arith.subf %166, %171 : vector<4x256xf32>
    %173 = arith.mulf %172, %172 : vector<4x256xf32>
    %cst_52 = arith.constant dense<0.000000e+00> : vector<4xf32>
    %174 = vector.multi_reduction <add>, %173, %cst_52 [1] : vector<4x256xf32> to vector<4xf32>
    %175 = vector.shape_cast %174 : vector<4xf32> to vector<4x1xf32>
    %cst_53 = arith.constant 3.906250e-03 : f32
    %176 = vector.broadcast %cst_53 : f32 to vector<4x1xf32>
    %177 = arith.mulf %175, %176 : vector<4x1xf32>
    %cst_54 = arith.constant 9.99999974E-6 : f32
    %178 = vector.broadcast %cst_54 : f32 to vector<4x1xf32>
    %179 = arith.addf %177, %178 : vector<4x1xf32>
    %180 = math.rsqrt %179 : vector<4x1xf32>
    %181 = vector.broadcast %180 : vector<4x1xf32> to vector<4x256xf32>
    %182 = arith.mulf %172, %181 : vector<4x256xf32>
    %183 = arith.addf %26, %182 : vector<4x256xf32>
    %c0_55 = arith.constant 0 : index
    %c0_56 = arith.constant 0 : index
    %c0_57 = arith.constant 0 : index
    %184 = vector.load %arg4[%c0_55, %c0_56, %c0_57] : memref<1x4x256xf32, #tpu.memory_space<vmem>>, vector<1x4x256xf32>
    %185 = vector.shape_cast %184 : vector<1x4x256xf32> to vector<4x256xf32>
    %186 = vector.shape_cast %183 : vector<4x256xf32> to vector<1x4x256xf32>
    tpu.vector_store %arg4[%c0_55, %c0_56, %c0_57], %186 {strides = array<i32>} : memref<1x4x256xf32, #tpu.memory_space<vmem>>, vector<1x4x256xf32>,
    return
  }
  func.func @transform_0(%arg0: i32) -> (i32, i32, i32) {
    %c0_i32 = arith.constant 0 : i32
    %c0_i32_0 = arith.constant 0 : i32
    %c0_i32_1 = arith.constant 0 : i32
    return %arg0, %c0_i32, %c0_i32_0 : i32, i32, i32
  }
  func.func @transform_1(%arg0: i32) -> (i32, i32) {
    %c0_i32 = arith.constant 0 : i32
    %c0_i32_0 = arith.constant 0 : i32
    %c0_i32_1 = arith.constant 0 : i32
    return %c0_i32, %c0_i32_0 : i32, i32
  }
  func.func @transform_2(%arg0: i32) -> (i32, i32) {
    %c0_i32 = arith.constant 0 : i32
    %c0_i32_0 = arith.constant 0 : i32
    %c0_i32_1 = arith.constant 0 : i32
    return %c0_i32, %c0_i32_0 : i32, i32
  }
  func.func @transform_3(%arg0: i32) -> (i32, i32, i32) {
    %c0_i32 = arith.constant 0 : i32
    %c0_i32_0 = arith.constant 0 : i32
    %c0_i32_1 = arith.constant 0 : i32
    return %arg0, %c0_i32, %c0_i32_0 : i32, i32, i32
  }
}

</mosaic_0001>

<llo_original>
// kernel: residual_block.1
$region0: #{residual_block.1}
  #allocation0 [shape = 'u32[]', space=smem, size = 0x4, offset = 0x4, fixed_abs, tag = 'smem constant byte address 0x4 - core index']
  #allocation1 [shape = 'u32[144,128]{1,0:T(1,128)}', space=vmem, size = 0x12000, scoped, tag = 'internal scratch']
  #allocation2 [shape = 'bf16[36,256]{1,0:T(8,128)(2,1)}', space=vmem, size = 0x5000, scoped, tag = 'scratch operand']
  %s0 = inlined_call_operand.vmem [shape: f32[2,4,256], index: 0, kind: input, shape index: {}]
  %s1 = inlined_call_operand.vmem [shape: bf16[4,36], index: 1, kind: input, shape index: {}]
  %s2 = inlined_call_operand.vmem [shape: bf16[4,36], index: 2, kind: input, shape index: {}]
  %s3 = inlined_call_operand.vmem [shape: f32[2,4,256], index: 3, kind: output, shape index: {}]
  %s4 = sld [smem:[#allocation0]]
  $region45: #{residual_block.1} parent=0
    _
  %s6 = ssub.s32 1, %s4
  %s7 = scalar_select 0, %s6, %s4
  loop: start=0, step=1, limit=4
  $region2: #{residual_block.1} parent=0 // loop_pre_header
    _
  $region3: #{residual_block.1} parent=0 // loop_header
    %s9 = sphi 0, %s13
    %p10 = scmp.ge.s32.totalorder %s9, 4
    %s19 = sphi 0, %s21
    %s22 = sphi 0, %s19
    %s23 = sphi 0, %s22
    %s39 = sphi 0, %s23
    %s43 = sphi 0, %s43
    %s45 = sphi 0, %s43
    %s46 = sphi 0, %s45
    %s60 = sphi 0, %s46
    %s64 = sphi 0, %s64
    %s66 = sphi 0, %s64
    %s67 = sphi 0, %s66
    %s81 = sphi 0, %s67
    %s87 = sphi 0, %s89
    %s90 = sphi 0, %s87
    %s91 = sphi 0, %s90
    %s107 = sphi 0, %s91
  $region4: #{residual_block.1} parent=0 // loop_header_branch
    %12 = sbr.rel (%p10) target = $region8
  $region5: #{residual_block.1} parent=0 // loop_body
    %s14 = ssub.s32 %s9, 1
    %s15 = ssub.s32 %s9, 2
    %s16 = sadd.s32 %s9, 1
    %s17 = ssub.s32 %s9, %s16
    %p18 = scmp.eq.s32.totalorder %s17, 0
    %s20 = sadd.s32 %s19, 1
    %s21 = scalar_select %p18, %s19, %s20
    %p24 = pneg %p18
    %p25 = scmp.eq.s32.totalorder %s9, 1
    %p26 = por %p24, %p25
    %p27 = scmp.ne.s32.totalorder %s19, %s22
    %p28 = scmp.eq.s32.totalorder %s9, 0
    %p29 = por %p27, %p28
    %p30 = scmp.ne.s32.totalorder %s19, %s22
    %p31 = scmp.eq.s32.totalorder %s14, 1
    %p32 = por %p30, %p31
    %p33 = scmp.ne.s32.totalorder %s22, %s23
    %p34 = scmp.eq.s32.totalorder %s14, 0
    %p35 = por %p33, %p34
    %p36 = scmp.ne.s32.totalorder %s22, %s23
    %p37 = scmp.eq.s32.totalorder %s15, 1
    %p38 = por %p36, %p37
    %p40 = scmp.ne.s32.totalorder %s23, %s39
    %p41 = scmp.eq.s32.totalorder %s15, 0
    %p42 = por %p40, %p41
    %s44 = sadd.s32 %s43, 1
    %p47 = scmp.eq.s32.totalorder %s9, 1
    %p48 = scmp.ne.s32.totalorder %s43, %s45
    %p49 = scmp.eq.s32.totalorder %s9, 0
    %p50 = por %p48, %p49
    %p51 = scmp.ne.s32.totalorder %s43, %s45
    %p52 = scmp.eq.s32.totalorder %s14, 1
    %p53 = por %p51, %p52
    %p54 = scmp.ne.s32.totalorder %s45, %s46
    %p55 = scmp.eq.s32.totalorder %s14, 0
    %p56 = por %p54, %p55
    %p57 = scmp.ne.s32.totalorder %s45, %s46
    %p58 = scmp.eq.s32.totalorder %s15, 1
    %p59 = por %p57, %p58
    %p61 = scmp.ne.s32.totalorder %s46, %s60
    %p62 = scmp.eq.s32.totalorder %s15, 0
    %p63 = por %p61, %p62
    %s65 = sadd.s32 %s64, 1
    %p68 = scmp.eq.s32.totalorder %s9, 1
    %p69 = scmp.ne.s32.totalorder %s64, %s66
    %p70 = scmp.eq.s32.totalorder %s9, 0
    %p71 = por %p69, %p70
    %p72 = scmp.ne.s32.totalorder %s64, %s66
    %p73 = scmp.eq.s32.totalorder %s14, 1
    %p74 = por %p72, %p73
    %p75 = scmp.ne.s32.totalorder %s66, %s67
    %p76 = scmp.eq.s32.totalorder %s14, 0
    %p77 = por %p75, %p76
    %p78 = scmp.ne.s32.totalorder %s66, %s67
    %p79 = scmp.eq.s32.totalorder %s15, 1
    %p80 = por %p78, %p79
    %p82 = scmp.ne.s32.totalorder %s67, %s81
    %p83 = scmp.eq.s32.totalorder %s15, 0
    %p84 = por %p82, %p83
    %s85 = ssub.s32 %s9, %s16
    %p86 = scmp.eq.s32.totalorder %s85, 0
    %s88 = sadd.s32 %s87, 1
    %s89 = scalar_select %p86, %s87, %s88
    %p92 = pneg %p86
    %p93 = scmp.eq.s32.totalorder %s9, 1
    %p94 = por %p92, %p93
    %p95 = scmp.ne.s32.totalorder %s87, %s90
    %p96 = scmp.eq.s32.totalorder %s9, 0
    %p97 = por %p95, %p96
    %p98 = scmp.ne.s32.totalorder %s87, %s90
    %p99 = scmp.eq.s32.totalorder %s14, 1
    %p100 = por %p98, %p99
    %p101 = scmp.ne.s32.totalorder %s90, %s91
    %p102 = scmp.eq.s32.totalorder %s14, 0
    %p103 = por %p101, %p102
    %p104 = scmp.ne.s32.totalorder %s90, %s91
    %p105 = scmp.eq.s32.totalorder %s15, 1
    %p106 = por %p104, %p105
    %p108 = scmp.ne.s32.totalorder %s91, %s107
    %p109 = scmp.eq.s32.totalorder %s15, 0
    %p110 = por %p108, %p109
    %p111 = scmp.le.s32.totalorder 1, %s9
    %p112 = scmp.lt.s32.totalorder %s9, 3
    %p113 = pnand %p111, %p112
    %p114 = pneg %p113
    // Predicated region
    $region9: #{residual_block.1} parent=5 // pred_check
      _
    $region10: #{residual_block.1} parent=5 // pred_check_branch
      %116 = sbr.rel (%p113) target = $region12
    $region11: #{residual_block.1} parent=5 // pred_region
      %s117 = ssub.s32 %s9, 1
      // Predicated region
      $region13: #{residual_block.1} parent=11 // pred_check
        %p118 = pneg %p56
      $region14: #{residual_block.1} parent=11 // pred_check_branch
        %120 = sbr.rel (%p118) target = $region16
      $region15: #{residual_block.1} parent=11 // pred_region
        _
      $region16: #{residual_block.1} parent=11 // pred_fallthru
        _
      // Predicated region
      $region17: #{residual_block.1} parent=11 // pred_check
        %p121 = pneg %p77
      $region18: #{residual_block.1} parent=11 // pred_check_branch
        %123 = sbr.rel (%p121) target = $region20
      $region19: #{residual_block.1} parent=11 // pred_region
        _
      $region20: #{residual_block.1} parent=11 // pred_fallthru
        _
    $region12: #{residual_block.1} parent=5 // pred_fallthru
      _
    %p124 = scmp.lt.s32.totalorder %s9, 2
    // Predicated region
    $region21: #{residual_block.1} parent=5 // pred_check
      %p125 = pneg %p124
    $region22: #{residual_block.1} parent=5 // pred_check_branch
      %127 = sbr.rel (%p125) target = $region24
    $region23: #{residual_block.1} parent=5 // pred_region
      // Predicated region
      $region25: #{residual_block.1} parent=23 // pred_check
        %p128 = pneg %p29
      $region26: #{residual_block.1} parent=23 // pred_check_branch
        %130 = sbr.rel (%p128) target = $region28
      $region27: #{residual_block.1} parent=23 // pred_region
        %p131 = scmp.lt.s32.totalorder %s9, 1
        %s132 = scalar_select %p131, %s9, 1
        %s133 = smul.addr %s132, 2
        %s134 = smul.addr %s133, 4
        %s135 = scalar_lea.vmem %s0, %s134
      $region28: #{residual_block.1} parent=23 // pred_fallthru
        _
    $region24: #{residual_block.1} parent=5 // pred_fallthru
      _
    %p136 = scmp.le.s32.totalorder 1, %s9
    %p137 = scmp.lt.s32.totalorder %s9, 3
    %p138 = pnand %p136, %p137
    %p139 = pneg %p138
    // Predicated region
    $region29: #{residual_block.1} parent=5 // pred_check
      _
    $region30: #{residual_block.1} parent=5 // pred_check_branch
      %141 = sbr.rel (%p138) target = $region32
    $region31: #{residual_block.1} parent=5 // pred_region
      %s142 = ssub.s32 %s9, 1
      %p143 = scmp.lt.s32.totalorder %s14, 1
      %s144 = scalar_select %p143, %s14, 1
      %s145 = smul.addr %s144, 2
      %s146 = smul.addr %s145, 4
      %s147 = scalar_lea.vmem %s0, %s146
      %p148 = pneg %p35
      %p149 = pneg %p32
      %p150 = pneg %p56
      %p151 = pneg %p53
      %p152 = pneg %p77
      %p153 = pneg %p74
      %p154 = pneg %p103
      %p155 = pneg %p100
      %p156 = scmp.lt.s32.totalorder %s14, 1
      %s157 = scalar_select %p156, %s14, 1
      %s158 = smul.addr %s157, 2
      %s159 = smul.addr %s158, 4
      %s160 = scalar_lea.vmem %s3, %s159
      %p161 = scmp.lt.s32.totalorder %s14, 1
      %s162 = scalar_select %p161, %s14, 1
      %s163 = smul.addr %s162, 2
      %s164 = smul.addr %s163, 4
      %s165 = scalar_lea.vmem %s0, %s164
      %p166 = scmp.lt.s32.totalorder %s14, 1
      %s167 = scalar_select %p166, %s14, 1
      %s168 = smul.addr %s167, 2
      %s169 = smul.addr %s168, 4
      %s170 = scalar_lea.vmem %s3, %s169
      %v174 = vlaneseq
      %v175 = vand.u32 %v174, 127
      %v176 = vadd.s32 %v175, 128
      %vm177 = vcmp.lt.s32.totalorder %v175, 0
      %v178 = vsub.s32 0, %v175
      %v179 = vsel %vm177, %v178, %v175
      %v180 = vshrl.u32 %v179, 4
      %v181 = vand.u32 %v179, 15
      %v182 = vsub.s32 0, %v181
      %v183 = vsel %vm177, %v182, %v181
      %vm184 = vcmp.lt.s32.totalorder %v176, 0
      %v185 = vsub.s32 0, %v176
      %v186 = vsel %vm184, %v185, %v176
      %v187 = vshrl.u32 %v186, 4
      %v188 = vand.u32 %v186, 15
      %v189 = vsub.s32 0, %v188
      %v190 = vsel %vm184, %v189, %v188
      %vm191 = vcmp.ne.s32.totalorder %v183, 0
      %vm192 = vcmp.ne.s32.totalorder %v190, 0
      %vm193 = vcmp.lt.s32.totalorder %v183, 0
      %vm194 = vcmp.lt.s32.totalorder %v190, 0
      %vm195 = vmand %vm193, %vm191
      %vm196 = vmand %vm194, %vm192
      %v197 = vadd.s32 %v183, 16
      %v198 = vadd.s32 %v190, 16
      %v199 = vsel %vm195, %v197, %v183
      %v200 = vsel %vm196, %v198, %v190
      %vm201 = vcmp.eq.s32.totalorder %v199, 0
      %vm202 = vcmp.eq.s32.totalorder %v200, 0
      %vm203 = vcmp.eq.s32.totalorder %v199, 15
      %vm204 = vcmp.eq.s32.totalorder %v200, 15
      %vm205 = vcmp.lt.s32.totalorder %v175, 16
      %vm206 = vcmp.lt.s32.totalorder %v176, 16
      %vm207 = vcmp.ge.s32.totalorder %v175, 240
      %vm208 = vcmp.ge.s32.totalorder %v176, 240
      %v209 = vld [vmem:[%s165] sm:$0xff]
      %v211 = vcombine.high %v209, %v209
      %v213 = vpack.c.bf16 %v209, %v209
      %v214 = vpack.c.bf16 %v211, %v211
      %217 = vrot.lane.b32.xlu0 %v213, 112
      %v218 = vpop.permute.xlu0 %217
      %219 = vrot.lane.b32.xlu0 %v214, 112
      %v220 = vpop.permute.xlu0 %219
      %vm221 = vcmask 916480
      %v222 = vsel %vm221, %v218, %v220
      %vm224 = vcmask 916480
      %v227 = vsel %vm224, %v220, %v218
      %229 = vrot.lane.b32.xlu0 %v214, 16
      %v230 = vpop.permute.xlu0 %229
      %231 = vrot.lane.b32.xlu0 %v213, 16
      %v232 = vpop.permute.xlu0 %231
      %vm233 = vcmask 130048
      %v234 = vsel %vm233, %v232, %v230
      %vm236 = vcmask 130048
      %v239 = vsel %vm236, %v230, %v232
      %v241 = vsel %vm205, 1, 0
      %v242 = vsel %vm206, 1, 0
      %vm243 = vcmp.eq.s32.totalorder %v241, 1
      %vm244 = vcmp.eq.s32.totalorder %v242, 1
      %vm245 = vmpackc.low %vm244, %vm243
      %v246 = vsel %vm245, 65537, 0
      %v247 = vlaneseq
      %v248 = vshrl.u32 %v247, 7
      %v249 = vsub.s32 0, %v248
      %v250 = vrot.slane %v246, %v249
      %v251 = vlaneseq
      %v252 = vshrl.u32 %v251, 7
      %v253 = vsub.s32 4, %v252
      %v254 = vrot.slane %v246, %v253
      %vm255 = vcmp.ne.s16.totalorder %v250, 0
      %vm256 = vcmp.ne.s16.totalorder %v254, 0
      %v257 = vsel %vm255, %v222, %v239
      %v258 = vsel %vm256, %v227, %v234
      %v259 = vsel %vm207, 1, 0
      %v260 = vsel %vm208, 1, 0
      %vm261 = vcmp.eq.s32.totalorder %v259, 1
      %vm262 = vcmp.eq.s32.totalorder %v260, 1
      %vm263 = vmpackc.low %vm262, %vm261
      %v264 = vsel %vm263, 65537, 0
      %v265 = vlaneseq
      %v266 = vshrl.u32 %v265, 7
      %v267 = vsub.s32 0, %v266
      %v268 = vrot.slane %v264, %v267
      %v269 = vlaneseq
      %v270 = vshrl.u32 %v269, 7
      %v271 = vsub.s32 4, %v270
      %v272 = vrot.slane %v264, %v271
      %vm273 = vcmp.ne.s16.totalorder %v268, 0
      %vm274 = vcmp.ne.s16.totalorder %v272, 0
      %v275 = vsel %vm273, %v239, %v222
      %v276 = vsel %vm274, %v234, %v227
      %278 = vrot.lane.b32.xlu0 %v258, 1
      %v279 = vpop.permute.xlu0 %278
      %281 = vrot.lane.b32.xlu0 %v257, 1
      %v282 = vpop.permute.xlu0 %281
      %vm283 = vcmask 7168
      %v284 = vsel %vm283, %v282, %v279
      %vm286 = vcmask 7168
      %v289 = vsel %vm286, %v279, %v282
      %291 = vrot.lane.b32.xlu0 %v257, 127
      %v292 = vpop.permute.xlu0 %291
      %293 = vrot.lane.b32.xlu0 %v258, 127
      %v294 = vpop.permute.xlu0 %293
      %vm295 = vcmask 1039360
      %v296 = vsel %vm295, %v292, %v294
      %vm298 = vcmask 1039360
      %v301 = vsel %vm298, %v294, %v292
      %v303 = vsel %vm201, 1, 0
      %v304 = vsel %vm202, 1, 0
      %vm305 = vcmp.eq.s32.totalorder %v303, 1
      %vm306 = vcmp.eq.s32.totalorder %v304, 1
      %vm307 = vmpackc.low %vm306, %vm305
      %v308 = vsel %vm307, 65537, 0
      %v309 = vlaneseq
      %v310 = vshrl.u32 %v309, 7
      %v311 = vsub.s32 0, %v310
      %v312 = vrot.slane %v308, %v311
      %v313 = vlaneseq
      %v314 = vshrl.u32 %v313, 7
      %v315 = vsub.s32 4, %v314
      %v316 = vrot.slane %v308, %v315
      %vm317 = vcmp.ne.s16.totalorder %v312, 0
      %vm318 = vcmp.ne.s16.totalorder %v316, 0
      %v319 = vsel %vm317, %v296, %v289
      %v320 = vsel %vm318, %v301, %v284
      %v321 = vsel %vm203, 1, 0
      %v322 = vsel %vm204, 1, 0
      %vm323 = vcmp.eq.s32.totalorder %v321, 1
      %vm324 = vcmp.eq.s32.totalorder %v322, 1
      %vm325 = vmpackc.low %vm324, %vm323
      %v326 = vsel %vm325, 65537, 0
      %v327 = vlaneseq
      %v328 = vshrl.u32 %v327, 7
      %v329 = vsub.s32 0, %v328
      %v330 = vrot.slane %v326, %v329
      %v331 = vlaneseq
      %v332 = vshrl.u32 %v331, 7
      %v333 = vsub.s32 4, %v332
      %v334 = vrot.slane %v326, %v333
      %vm335 = vcmp.ne.s16.totalorder %v330, 0
      %vm336 = vcmp.ne.s16.totalorder %v334, 0
      %v337 = vsel %vm335, %v289, %v296
      %v338 = vsel %vm336, %v284, %v301
      %v341 = vunpack.c.l.b16 %v319
      %v342 = vunpack.c.l.b16 %v320
      %v343 = vpack.c.b16 %v342, %v341
      %345 = vst [vmem:[#allocation2] sm:$0x33] %v343
      %v346 = vunpack.c.l.b16 %v257
      %v347 = vunpack.c.l.b16 %v258
      %v348 = vpack.c.b16 %v347, %v346
      %v349 = vrot.slane %v348, 6
      %351 = vst [vmem:[#allocation2] sm:$0xcc] %v349
      %v354 = vunpack.c.l.b16 %v337
      %v355 = vunpack.c.l.b16 %v338
      %v356 = vpack.c.b16 %v355, %v354
      %358 = vst [vmem:[#allocation2 + $0x8] sm:$0x33] %v356
      %359 = vrot.lane.b32.xlu0 %v214, 1
      %v360 = vpop.permute.xlu0 %359
      %361 = vrot.lane.b32.xlu0 %v213, 1
      %v362 = vpop.permute.xlu0 %361
      %v363 = vsel %vm283, %v362, %v360
      %v367 = vsel %vm286, %v360, %v362
      %369 = vrot.lane.b32.xlu0 %v213, 127
      %v370 = vpop.permute.xlu0 %369
      %371 = vrot.lane.b32.xlu0 %v214, 127
      %v372 = vpop.permute.xlu0 %371
      %v373 = vsel %vm295, %v370, %v372
      %v377 = vsel %vm298, %v372, %v370
      %v379 = vsel %vm317, %v373, %v367
      %v380 = vsel %vm318, %v377, %v363
      %v381 = vsel %vm335, %v367, %v373
      %v382 = vsel %vm336, %v363, %v377
      %v385 = vunpack.c.l.b16 %v379
      %v386 = vunpack.c.l.b16 %v380
      %v387 = vpack.c.b16 %v386, %v385
      %v388 = vrot.slane %v387, 6
      %390 = vst [vmem:[#allocation2 + $0x8] sm:$0xcc] %v388
      %v391 = vunpack.c.l.b16 %v213
      %v392 = vunpack.c.l.b16 %v214
      %v393 = vpack.c.b16 %v392, %v391
      %395 = vst [vmem:[#allocation2 + $0x10] sm:$0x33] %v393
      %v398 = vunpack.c.l.b16 %v381
      %v399 = vunpack.c.l.b16 %v382
      %v400 = vpack.c.b16 %v399, %v398
      %v401 = vrot.slane %v400, 6
      %403 = vst [vmem:[#allocation2 + $0x10] sm:$0xcc] %v401
      %405 = vrot.lane.b32.xlu0 %v276, 1
      %v406 = vpop.permute.xlu0 %405
      %408 = vrot.lane.b32.xlu0 %v275, 1
      %v409 = vpop.permute.xlu0 %408
      %v410 = vsel %vm283, %v409, %v406
      %v414 = vsel %vm286, %v406, %v409
      %416 = vrot.lane.b32.xlu0 %v275, 127
      %v417 = vpop.permute.xlu0 %416
      %418 = vrot.lane.b32.xlu0 %v276, 127
      %v419 = vpop.permute.xlu0 %418
      %v420 = vsel %vm295, %v417, %v419
      %v424 = vsel %vm298, %v419, %v417
      %v426 = vsel %vm317, %v420, %v414
      %v427 = vsel %vm318, %v424, %v410
      %v428 = vsel %vm335, %v414, %v420
      %v429 = vsel %vm336, %v410, %v424
      %v432 = vunpack.c.l.b16 %v426
      %v433 = vunpack.c.l.b16 %v427
      %v434 = vpack.c.b16 %v433, %v432
      %436 = vst [vmem:[#allocation2 + $0x18] sm:$0x33] %v434
      %v437 = vunpack.c.l.b16 %v275
      %v438 = vunpack.c.l.b16 %v276
      %v439 = vpack.c.b16 %v438, %v437
      %v440 = vrot.slane %v439, 6
      %442 = vst [vmem:[#allocation2 + $0x18] sm:$0xcc] %v440
      %v445 = vunpack.c.l.b16 %v428
      %v446 = vunpack.c.l.b16 %v429
      %v447 = vpack.c.b16 %v446, %v445
      %449 = vst [vmem:[#allocation2 + $0x20] sm:$0x33] %v447
      %v450 = vld [vmem:[%s1] sm:$0x3]
      %v451 = vld [vmem:[#allocation2] sm:$0xff]
      %v452 = vld [vmem:[#allocation2 + $0x8] sm:$0xff]
      %v453 = vld [vmem:[#allocation2 + $0x10] sm:$0xff]
      %v454 = vld [vmem:[#allocation2 + $0x18] sm:$0xff]
      %v455 = vld [vmem:[#allocation2 + $0x20] sm:$0x33]
      %v461 = vunpack.c.l.b16 %v451
      %v462 = vunpack.c.h.b16 %v451
      %v463 = vunpack.c.l.b16 %v452
      %v464 = vunpack.c.h.b16 %v452
      %v465 = vunpack.c.l.b16 %v453
      %v466 = vunpack.c.h.b16 %v453
      %v467 = vunpack.c.l.b16 %v454
      %v468 = vunpack.c.h.b16 %v454
      %v469 = vunpack.c.l.b16 %v455
      %v470 = vunpack.c.h.b16 %v455
      %v471 = vpack.c.b16 %v463, %v461
      %v472 = vpack.c.b16 %v464, %v462
      %v473 = vpack.c.b16 %v467, %v465
      %v474 = vpack.c.b16 %v468, %v466
      %v475 = vpack.c.b16 %v469, %v469
      %v476 = vpack.c.b16 %v470, %v470
      %vm481 = vcmask 293888
      %v483 = vsel %vm481, %v450, 0
      %vm485 = vcmask 1041408
      %v487 = vsel %vm485, %v475, 0
      %v490 = vsel %vm485, %v476, 0
      %492 = vmatprep.subr.bf16.mxu0 %v472
      %493 = vmatpush1.bf16.msra.mxu0 %v471
      %494 = vmatprep.subr.bf16.mxu0 %v474
      %495 = vmatpush1.bf16.msra.mxu0 %v473
      %496 = vmatprep.subr.bf16.mxu0 %v490
      %497 = vmatpush1.bf16.msra.mxu0 %v487
      %498 = vmatprep.subr.bf16.mxu0 0
      %499 = vmatpush1.bf16.msra.mxu0 0
      %500 = vmatprep.subr.bf16.mxu0 0
      %501 = vmatpush1.bf16.msra.mxu0 0
      %502 = vmatprep.subr.bf16.mxu0 0
      %503 = vmatpush1.bf16.msra.mxu0 0
      %504 = vmatprep.subr.bf16.mxu0 0
      %505 = vmatpush1.bf16.msra.mxu0 0
      %506 = vmatprep.subr.bf16.mxu0 0
      %507 = vmatpush1.bf16.msra.mxu0 0
      %508 = vmatprep.subr.bf16.mxu0 0
      %509 = vmatpush1.bf16.msra.mxu0 0
      %510 = vmatprep.subr.bf16.mxu0 0
      %511 = vmatpush1.bf16.msra.mxu0 0
      %512 = vmatprep.subr.bf16.mxu0 0
      %513 = vmatpush1.bf16.msra.mxu0 0
      %514 = vmatprep.subr.bf16.mxu0 0
      %515 = vmatpush1.bf16.msra.mxu0 0
      %516 = vmatprep.subr.bf16.mxu0 0
      %517 = vmatpush1.bf16.msra.mxu0 0
      %518 = vmatprep.subr.bf16.mxu0 0
      %519 = vmatpush1.bf16.msra.mxu0 0
      %520 = vmatprep.subr.bf16.mxu0 0
      %521 = vmatpush1.bf16.msra.mxu0 0
      %522 = vmatprep.subr.bf16.mxu0 0
      %523 = vmatpush1.bf16.msra.mxu0 0
      %524 = vmatprep.mubr.bf16.mxu0 0
      %525 = vmatmul.mubr.bf16.gmra.mrb[0].mxu0 %v483
      %v526 = vpop.f32.mrb[0].mxu0
      %v527 = vadd.f32 0.0, %v526
      %v528 = vpop.f32.mrb[0].mxu0
      %v529 = vadd.f32 0.0, %v528
      %v530 = vpop.f32.mrb[0].mxu0
      %v531 = vpop.f32.mrb[0].mxu0
      %532 = vdwg.mxu0
      %vm533 = vcmask 1043456
      %v534 = vsel %vm533, %v527, 0.0
      %v535 = vsel %vm533, %v529, 0.0
      %v536 = vadd.f32 %v534, %v535
      %537 = vadd.xlane.f32.xlu0 %v536
      %v538 = vpop.xlane.xlu0 %537
      %v539 = vmul.f32 %v538, 0.00390625
      %v540 = vsub.f32 %v527, %v539
      %v541 = vsub.f32 %v529, %v539
      %v542 = vmul.f32 %v540, %v540
      %v543 = vmul.f32 %v541, %v541
      %v544 = vsel %vm533, %v542, 0.0
      %v545 = vsel %vm533, %v543, 0.0
      %v546 = vadd.f32 %v544, %v545
      %547 = vadd.xlane.f32.xlu0 %v546
      %v548 = vpop.xlane.xlu0 %547
      %v549 = vmul.f32 %v548, 0.00390625
      %v550 = vadd.f32 %v549, 1e-05
      %v551 = vrsqrt.pop %v550
      %v552 = vmul.f32 %v540, %v551
      %v553 = vmul.f32 %v541, %v551
      %v554 = vmax.f32 %v552, 0.0
      %v555 = vmax.f32 %v553, 0.0
      %v556 = vpack.c.bf16 %v554, %v554
      %v557 = vpack.c.bf16 %v555, %v555
      %560 = vrot.lane.b32.xlu0 %v556, 112
      %v561 = vpop.permute.xlu0 %560
      %562 = vrot.lane.b32.xlu0 %v557, 112
      %v563 = vpop.permute.xlu0 %562
      %v564 = vsel %vm221, %v561, %v563
      %v568 = vsel %vm224, %v563, %v561
      %570 = vrot.lane.b32.xlu0 %v557, 16
      %v571 = vpop.permute.xlu0 %570
      %572 = vrot.lane.b32.xlu0 %v556, 16
      %v573 = vpop.permute.xlu0 %572
      %v574 = vsel %vm233, %v573, %v571
      %v578 = vsel %vm236, %v571, %v573
      %v580 = vsel %vm255, %v564, %v578
      %v581 = vsel %vm256, %v568, %v574
      %v582 = vsel %vm273, %v578, %v564
      %v583 = vsel %vm274, %v574, %v568
      %585 = vrot.lane.b32.xlu0 %v581, 1
      %v586 = vpop.permute.xlu0 %585
      %588 = vrot.lane.b32.xlu0 %v580, 1
      %v589 = vpop.permute.xlu0 %588
      %v590 = vsel %vm283, %v589, %v586
      %v594 = vsel %vm286, %v586, %v589
      %596 = vrot.lane.b32.xlu0 %v580, 127
      %v597 = vpop.permute.xlu0 %596
      %598 = vrot.lane.b32.xlu0 %v581, 127
      %v599 = vpop.permute.xlu0 %598
      %v600 = vsel %vm295, %v597, %v599
      %v604 = vsel %vm298, %v599, %v597
      %v606 = vsel %vm317, %v600, %v594
      %v607 = vsel %vm318, %v604, %v590
      %v608 = vsel %vm335, %v594, %v600
      %v609 = vsel %vm336, %v590, %v604
      %v612 = vunpack.c.l.b16 %v606
      %v613 = vunpack.c.l.b16 %v607
      %v614 = vpack.c.b16 %v613, %v612
      %616 = vst [vmem:[#allocation2] sm:$0x33] %v614
      %v617 = vunpack.c.l.b16 %v580
      %v618 = vunpack.c.l.b16 %v581
      %v619 = vpack.c.b16 %v618, %v617
      %v620 = vrot.slane %v619, 6
      %622 = vst [vmem:[#allocation2] sm:$0xcc] %v620
      %v625 = vunpack.c.l.b16 %v608
      %v626 = vunpack.c.l.b16 %v609
      %v627 = vpack.c.b16 %v626, %v625
      %629 = vst [vmem:[#allocation2 + $0x8] sm:$0x33] %v627
      %630 = vrot.lane.b32.xlu0 %v557, 1
      %v631 = vpop.permute.xlu0 %630
      %632 = vrot.lane.b32.xlu0 %v556, 1
      %v633 = vpop.permute.xlu0 %632
      %v634 = vsel %vm283, %v633, %v631
      %v638 = vsel %vm286, %v631, %v633
      %640 = vrot.lane.b32.xlu0 %v556, 127
      %v641 = vpop.permute.xlu0 %640
      %642 = vrot.lane.b32.xlu0 %v557, 127
      %v643 = vpop.permute.xlu0 %642
      %v644 = vsel %vm295, %v641, %v643
      %v648 = vsel %vm298, %v643, %v641
      %v650 = vsel %vm317, %v644, %v638
      %v651 = vsel %vm318, %v648, %v634
      %v652 = vsel %vm335, %v638, %v644
      %v653 = vsel %vm336, %v634, %v648
      %v656 = vunpack.c.l.b16 %v650
      %v657 = vunpack.c.l.b16 %v651
      %v658 = vpack.c.b16 %v657, %v656
      %v659 = vrot.slane %v658, 6
      %661 = vst [vmem:[#allocation2 + $0x8] sm:$0xcc] %v659
      %v662 = vunpack.c.l.b16 %v556
      %v663 = vunpack.c.l.b16 %v557
      %v664 = vpack.c.b16 %v663, %v662
      %666 = vst [vmem:[#allocation2 + $0x10] sm:$0x33] %v664
      %v669 = vunpack.c.l.b16 %v652
      %v670 = vunpack.c.l.b16 %v653
      %v671 = vpack.c.b16 %v670, %v669
      %v672 = vrot.slane %v671, 6
      %674 = vst [vmem:[#allocation2 + $0x10] sm:$0xcc] %v672
      %676 = vrot.lane.b32.xlu0 %v583, 1
      %v677 = vpop.permute.xlu0 %676
      %679 = vrot.lane.b32.xlu0 %v582, 1
      %v680 = vpop.permute.xlu0 %679
      %v681 = vsel %vm283, %v680, %v677
      %v685 = vsel %vm286, %v677, %v680
      %687 = vrot.lane.b32.xlu0 %v582, 127
      %v688 = vpop.permute.xlu0 %687
      %689 = vrot.lane.b32.xlu0 %v583, 127
      %v690 = vpop.permute.xlu0 %689
      %v691 = vsel %vm295, %v688, %v690
      %v695 = vsel %vm298, %v690, %v688
      %v697 = vsel %vm317, %v691, %v685
      %v698 = vsel %vm318, %v695, %v681
      %v699 = vsel %vm335, %v685, %v691
      %v700 = vsel %vm336, %v681, %v695
      %v703 = vunpack.c.l.b16 %v697
      %v704 = vunpack.c.l.b16 %v698
      %v705 = vpack.c.b16 %v704, %v703
      %707 = vst [vmem:[#allocation2 + $0x18] sm:$0x33] %v705
      %v708 = vunpack.c.l.b16 %v582
      %v709 = vunpack.c.l.b16 %v583
      %v710 = vpack.c.b16 %v709, %v708
      %v711 = vrot.slane %v710, 6
      %713 = vst [vmem:[#allocation2 + $0x18] sm:$0xcc] %v711
      %v716 = vunpack.c.l.b16 %v699
      %v717 = vunpack.c.l.b16 %v700
      %v718 = vpack.c.b16 %v717, %v716
      %720 = vst [vmem:[#allocation2 + $0x20] sm:$0x33] %v718
      %v721 = vld [vmem:[%s2] sm:$0x3]
      %v722 = vld [vmem:[#allocation2] sm:$0xff]
      %v723 = vld [vmem:[#allocation2 + $0x8] sm:$0xff]
      %v724 = vld [vmem:[#allocation2 + $0x10] sm:$0xff]
      %v725 = vld [vmem:[#allocation2 + $0x18] sm:$0xff]
      %v726 = vld [vmem:[#allocation2 + $0x20] sm:$0x33]
      %v732 = vunpack.c.l.b16 %v722
      %v733 = vunpack.c.h.b16 %v722
      %v734 = vunpack.c.l.b16 %v723
      %v735 = vunpack.c.h.b16 %v723
      %v736 = vunpack.c.l.b16 %v724
      %v737 = vunpack.c.h.b16 %v724
      %v738 = vunpack.c.l.b16 %v725
      %v739 = vunpack.c.h.b16 %v725
      %v740 = vunpack.c.l.b16 %v726
      %v741 = vunpack.c.h.b16 %v726
      %v742 = vpack.c.b16 %v734, %v732
      %v743 = vpack.c.b16 %v735, %v733
      %v744 = vpack.c.b16 %v738, %v736
      %v745 = vpack.c.b16 %v739, %v737
      %v746 = vpack.c.b16 %v740, %v740
      %v747 = vpack.c.b16 %v741, %v741
      %v753 = vsel %vm481, %v721, 0
      %v756 = vsel %vm485, %v746, 0
      %v759 = vsel %vm485, %v747, 0
      %761 = vmatprep.subr.bf16.mxu0 %v743
      %762 = vmatpush1.bf16.msra.mxu0 %v742
      %763 = vmatprep.subr.bf16.mxu0 %v745
      %764 = vmatpush1.bf16.msra.mxu0 %v744
      %765 = vmatprep.subr.bf16.mxu0 %v759
      %766 = vmatpush1.bf16.msra.mxu0 %v756
      %767 = vmatprep.subr.bf16.mxu0 0
      %768 = vmatpush1.bf16.msra.mxu0 0
      %769 = vmatprep.subr.bf16.mxu0 0
      %770 = vmatpush1.bf16.msra.mxu0 0
      %771 = vmatprep.subr.bf16.mxu0 0
      %772 = vmatpush1.bf16.msra.mxu0 0
      %773 = vmatprep.subr.bf16.mxu0 0
      %774 = vmatpush1.bf16.msra.mxu0 0
      %775 = vmatprep.subr.bf16.mxu0 0
      %776 = vmatpush1.bf16.msra.mxu0 0
      %777 = vmatprep.subr.bf16.mxu0 0
      %778 = vmatpush1.bf16.msra.mxu0 0
      %779 = vmatprep.subr.bf16.mxu0 0
      %780 = vmatpush1.bf16.msra.mxu0 0
      %781 = vmatprep.subr.bf16.mxu0 0
      %782 = vmatpush1.bf16.msra.mxu0 0
      %783 = vmatprep.subr.bf16.mxu0 0
      %784 = vmatpush1.bf16.msra.mxu0 0
      %785 = vmatprep.subr.bf16.mxu0 0
      %786 = vmatpush1.bf16.msra.mxu0 0
      %787 = vmatprep.subr.bf16.mxu0 0
      %788 = vmatpush1.bf16.msra.mxu0 0
      %789 = vmatprep.subr.bf16.mxu0 0
      %790 = vmatpush1.bf16.msra.mxu0 0
      %791 = vmatprep.subr.bf16.mxu0 0
      %792 = vmatpush1.bf16.msra.mxu0 0
      %793 = vmatprep.mubr.bf16.mxu0 0
      %794 = vmatmul.mubr.bf16.gmra.mrb[0].mxu0 %v753
      %v795 = vpop.f32.mrb[0].mxu0
      %v796 = vadd.f32 0.0, %v795
      %v797 = vpop.f32.mrb[0].mxu0
      %v798 = vadd.f32 0.0, %v797
      %v799 = vpop.f32.mrb[0].mxu0
      %v800 = vpop.f32.mrb[0].mxu0
      %801 = vdwg.mxu0
      %v802 = vsel %vm533, %v796, 0.0
      %v803 = vsel %vm533, %v798, 0.0
      %v804 = vadd.f32 %v802, %v803
      %805 = vadd.xlane.f32.xlu0 %v804
      %v806 = vpop.xlane.xlu0 %805
      %v807 = vmul.f32 %v806, 0.00390625
      %v808 = vsub.f32 %v796, %v807
      %v809 = vsub.f32 %v798, %v807
      %v810 = vmul.f32 %v808, %v808
      %v811 = vmul.f32 %v809, %v809
      %v812 = vsel %vm533, %v810, 0.0
      %v813 = vsel %vm533, %v811, 0.0
      %v814 = vadd.f32 %v812, %v813
      %815 = vadd.xlane.f32.xlu0 %v814
      %v816 = vpop.xlane.xlu0 %815
      %v817 = vmul.f32 %v816, 0.00390625
      %v818 = vadd.f32 %v817, 1e-05
      %v819 = vrsqrt.pop %v818
      %v820 = vmul.f32 %v808, %v819
      %v821 = vmul.f32 %v809, %v819
      %v824 = vcombine.low %v820, %v821
      %v826 = vadd.f32 %v209, %v824
      %827 = vst [vmem:[%s170] sm:$0xff] %v826
      %p828 = scmp.lt.s32.totalorder %s14, 1
      %s829 = scalar_select %p828, %s14, 1
      %s830 = smul.addr %s829, 2
      %s831 = smul.addr %s830, 4
      %s832 = scalar_lea.vmem %s3, %s831
      // Predicated region
      $region33: #{residual_block.1} parent=31 // pred_check
        %p833 = pneg %p100
      $region34: #{residual_block.1} parent=31 // pred_check_branch
        %835 = sbr.rel (%p833) target = $region36
      $region35: #{residual_block.1} parent=31 // pred_region
        _
      $region36: #{residual_block.1} parent=31 // pred_fallthru
        _
    $region32: #{residual_block.1} parent=5 // pred_fallthru
      _
    %p836 = scmp.le.s32.totalorder 2, %s9
    // Predicated region
    $region37: #{residual_block.1} parent=5 // pred_check
      %p837 = pneg %p836
    $region38: #{residual_block.1} parent=5 // pred_check_branch
      %839 = sbr.rel (%p837) target = $region40
    $region39: #{residual_block.1} parent=5 // pred_region
      %s840 = ssub.s32 %s9, 2
      // Predicated region
      $region41: #{residual_block.1} parent=39 // pred_check
        %p841 = pneg %p106
      $region42: #{residual_block.1} parent=39 // pred_check_branch
        %843 = sbr.rel (%p841) target = $region44
      $region43: #{residual_block.1} parent=39 // pred_region
        %p844 = scmp.lt.s32.totalorder %s15, 1
        %s845 = scalar_select %p844, %s15, 1
        %s846 = smul.addr %s845, 2
        %s847 = smul.addr %s846, 4
        %s848 = scalar_lea.vmem %s3, %s847
      $region44: #{residual_block.1} parent=39 // pred_fallthru
        _
    $region40: #{residual_block.1} parent=5 // pred_fallthru
      _
  $region6: #{residual_block.1} parent=0 // loop_footer
    %s13 = sadd.s32 1, %s9
  $region7: #{residual_block.1} parent=0 // loop_footer_branch
    %8 = sbr.rel target = $region3
  $region8: #{residual_block.1} parent=0 // loop_exit
    _

</llo_original>
